<compile_context>
chip_gen: v7x
topology: tpu7x:2x2x1
jax: 0.10.0
libtpu: 0.0.40
codegen_flags: <defaults>
</compile_context>

<pallas_src>
import jax
import jax.numpy as jnp
from jax import lax
from jax.experimental import pallas as pl
from jax.experimental.pallas import tpu as pltpu


def _biaffine_kernel(x_ref, y_ref, w_ref, b_ref, o_ref, z_ref):
    """One (batch, Lx-tile, Ly-tile) grid step.

    x_ref : (1, tLx, F)                activations (compute dtype)
    y_ref : (1, tLy, F)                activations (compute dtype)
    w_ref : (F, O*F + O)               [A_0 | ... | A_{O-1} | u_y columns]
    b_ref : (1, O*F + O)   float32     [u_x rows flattened   | c          ]
    o_ref : (1, O, tLx, tLy)           lane-dense output (Ly on lanes)
    z_ref : (tLx, O*F + O) float32     VMEM scratch, reused across Ly tiles
    """
    O = o_ref.shape[1]
    F = y_ref.shape[2]

    # Fill the Z cache once per (batch, Lx-tile).  The Ly axis is innermost
    # and "arbitrary", so the scratch survives across all Ly tiles.
    #   Z[:, o*F:(o+1)*F] = x @ A_o + u_x[o]      (row bias folded in)
    #   Z[:, O*F + o]     = x @ u_y[o] + c[o]     (per-(x,o) additive term)
    @pl.when(pl.program_id(2) == 0)
    def _():
        z_ref[...] = (
            jnp.dot(x_ref[0], w_ref[...], preferred_element_type=jnp.float32)
            + b_ref[...])

    y = y_ref[0]                                     # (tLy, F)
    cb = z_ref[:, O * F:O * F + O]                   # (tLx, O) f32 additive terms
    contract_last = (((1,), (1,)), ((), ()))         # z_o . y^T

    # TODO(synk): for large O (>~16) switch this static unroll to lax.fori_loop
    # or an O grid axis to bound live ranges / compile time.
    for o in range(O):
        z_o = z_ref[:, o * F:(o + 1) * F]            # 128-aligned lane window
        if y.dtype != jnp.float32:
            z_o = z_o.astype(y.dtype)                # feed the MXU narrow
        core = lax.dot_general(z_o, y, contract_last,
                               preferred_element_type=jnp.float32)  # (tLx,tLy)
        o_ref[0, o] = (core + cb[:, o:o + 1]).astype(o_ref.dtype)


def _dim_candidates(dim, targets, align):
    cands = [t for t in targets if t < dim and t % align == 0]
    if dim <= max(targets):
        cands = [dim] + cands        # full extent is always a legal block
    return cands or [dim]


def _choose_tiles(Lx, Ly, Fp, O, in_bytes, param_bytes, out_bytes,
                  budget_bytes=28 * 1024 * 1024):
    """Pick (tLx, tLy) so the double-buffered working set fits the budget."""
    n_ext = O * Fp + O

    def working_set(tlx, tly):
        return (2 * (tlx + tly) * Fp * in_bytes      # x / y blocks (double buf)
                + 2 * O * tlx * tly * out_bytes      # output block (double buf)
                + 2 * Fp * n_ext * param_bytes       # W (counted x2, conservative)
                + 2 * n_ext * 4                      # bias row (f32)
                + tlx * n_ext * 4)                   # f32 Z scratch

    lx_cands = _dim_candidates(Lx, (256, 128, 64, 32, 16, 8), 8)
    ly_cands = _dim_candidates(Ly, (512, 256, 128), 128)     # lane axis: biggest
    for tly in ly_cands:
        for tlx in lx_cands:
            if working_set(tlx, tly) <= budget_bytes:
                return tlx, tly, working_set(tlx, tly)
    tlx, tly = lx_cands[-1], ly_cands[-1]
    return tlx, tly, working_set(tlx, tly)


def biaffine_pallas(x, y, U, bias_x=True, bias_y=True, *,
                    compute_dtype=None, out_layout="bxyo"):
    """x: (B, Lx, F), y: (B, Ly, F), U: (F+bias_x, O, F+bias_y).

    out_layout="bxyo" (default) matches torch.einsum('bxi,ioj,byj->bxyo');
    out_layout="boxy" returns the kernel-native lane-dense (B, O, Lx, Ly)
    layout without the extra HBM transpose (recommended for downstream use).
    compute_dtype=jnp.bfloat16 halves DMA bytes / doubles MXU rate (f32 acc).
    """
    B, Lx, F = x.shape
    By, Ly, Fy = y.shape
    I, O, J = U.shape
    assert By == B and Fy == F, (x.shape, y.shape)
    assert I == F + int(bias_x) and J == F + int(bias_y), (U.shape, F)
    assert out_layout in ("bxyo", "boxy")

    out_dtype = x.dtype
    param_dtype = compute_dtype if compute_dtype is not None else x.dtype
    if compute_dtype is not None:
        x = x.astype(compute_dtype)
        y = y.astype(compute_dtype)

    # Pad the contraction dim to a lane multiple so every per-channel slice is
    # 128-aligned.  The MXU pads K internally anyway; aligned feature sizes
    # skip this entirely (no HBM copy of x / y).
    Fp = max(128, -(-F // 128) * 128)
    if Fp != F:
        pad = Fp - F
        x = jnp.pad(x, ((0, 0), (0, 0), (0, pad)))
        y = jnp.pad(y, ((0, 0), (0, 0), (0, pad)))

    # ---- algebraic bias fold + channel-major flattening (trace time, HBM) ----
    A = jnp.pad(U[:F, :, :F], ((0, Fp - F), (0, 0), (0, Fp - F)))   # (Fp, O, Fp)
    uc_flat = A.reshape(Fp, O * Fp)                                  # [A_0|...|A_{O-1}]
    ucol = U[:F, :, F] if bias_y else jnp.zeros((F, O), U.dtype)
    ucol = jnp.pad(ucol, ((0, Fp - F), (0, 0)))                      # (Fp, O)
    w_ext = jnp.concatenate([uc_flat, ucol], axis=1).astype(param_dtype)

    ux = U[F, :, :F] if bias_x else jnp.zeros((O, F), U.dtype)
    ux = jnp.pad(ux, ((0, 0), (0, Fp - F))).reshape(O * Fp)
    c = U[F, :, F] if (bias_x and bias_y) else jnp.zeros((O,), U.dtype)
    # Additive bias row stays f32 (tiny; no bf16 loss on folded biases).
    b_ext = jnp.concatenate([ux, c]).astype(jnp.float32).reshape(1, O * Fp + O)
    n_ext = O * Fp + O

    tLx, tLy, ws = _choose_tiles(
        Lx, Ly, Fp, O,
        in_bytes=x.dtype.itemsize,
        param_bytes=jnp.dtype(param_dtype).itemsize,
        out_bytes=jnp.dtype(out_dtype).itemsize)
    grid = (B, pl.cdiv(Lx, tLx), pl.cdiv(Ly, tLy))
    vmem_limit = int(min(max(2 * ws + (8 << 20), 32 << 20), 48 << 20))

    out = pl.pallas_call(
        _biaffine_kernel,
        out_shape=jax.ShapeDtypeStruct((B, O, Lx, Ly), out_dtype),
        grid_spec=pltpu.PrefetchScalarGridSpec(
            num_scalar_prefetch=0,
            grid=grid,
            in_specs=[
                pl.BlockSpec((1, tLx, Fp), lambda b, i, j: (b, i, 0)),
                pl.BlockSpec((1, tLy, Fp), lambda b, i, j: (b, j, 0)),
                # Invariant weights: constant index maps -> reused, not re-DMA'd.
                pl.BlockSpec((Fp, n_ext), lambda b, i, j: (0, 0)),
                pl.BlockSpec((1, n_ext), lambda b, i, j: (0, 0)),
            ],
            out_specs=pl.BlockSpec((1, O, tLx, tLy),
                                   lambda b, i, j: (b, 0, i, j)),
            scratch_shapes=[pltpu.VMEM((tLx, n_ext), jnp.float32)],
        ),
        compiler_params=pltpu.CompilerParams(
            # Ly innermost + "arbitrary" so the Z scratch is reused across Ly
            # tiles; B / Lx stay "parallel" for megacore / v7x's two TCs.
            dimension_semantics=("parallel", "parallel", "arbitrary"),
            vmem_limit_bytes=vmem_limit,
        ),
    )(x, y, w_ext, b_ext)

    if out_layout == "boxy":
        return out                          # (B, O, Lx, Ly), no extra transpose
    # Module-compatible layout; prefer out_layout="boxy" downstream to avoid
    # re-reading/re-writing the largest HBM tensor.
    return jnp.transpose(out, (0, 2, 3, 1))


def biaffine_reference(x, y, U, bias_x=True, bias_y=True):
    if bias_x:
        x = jnp.concatenate([x, jnp.ones_like(x[..., :1])], axis=-1)
    if bias_y:
        y = jnp.concatenate([y, jnp.ones_like(y[..., :1])], axis=-1)
    return jnp.einsum('bxi,ioj,byj->bxyo', x, U, y,
                      precision=lax.Precision.HIGHEST)


if __name__ == "__main__":
    key = jax.random.PRNGKey(0)

    def check(out, ref, tol_frac, tag):
        scale = float(jnp.max(jnp.abs(ref)))
        err = float(jnp.max(jnp.abs(out.astype(jnp.float32) - ref)))
        assert err <= max(1e-3, tol_frac * scale), (tag, err, scale)

    # Small config consistent with the module: batch=2, seq=8, hidden=32, out=4.
    # Exercise all bias_x / bias_y combinations (different U shapes).
    B, L, in_size, out_size = 2, 8, 32, 4
    for bias_x in (True, False):
        for bias_y in (True, False):
            key, kx, ky, ku = jax.random.split(key, 4)
            x = jax.random.normal(kx, (B, L, in_size), dtype=jnp.float32)
            y = jax.random.normal(ky, (B, L, in_size), dtype=jnp.float32)
            U = jax.random.normal(
                ku, (in_size + int(bias_x), out_size, in_size + int(bias_y)),
                dtype=jnp.float32)
            out = jax.block_until_ready(
                biaffine_pallas(x, y, U, bias_x=bias_x, bias_y=bias_y))
            ref = biaffine_reference(x, y, U, bias_x=bias_x, bias_y=bias_y)
            assert out.shape == (B, L, L, out_size), out.shape
            check(out, ref, 0.02, ("small", bias_x, bias_y))

    # A shape that exercises Lx/Ly tiling and the Z cache (grid = (1, 2, 1)).
    B2, L2, in2, out2 = 1, 512, 128, 2
    key, kx, ky, ku = jax.random.split(key, 4)
    x = jax.random.normal(kx, (B2, L2, in2), dtype=jnp.float32)
    y = jax.random.normal(ky, (B2, L2, in2), dtype=jnp.float32)
    U = jax.random.normal(ku, (in2 + 1, out2, in2 + 1), dtype=jnp.float32)
    ref = biaffine_reference(x, y, U)

    out = jax.block_until_ready(biaffine_pallas(x, y, U))
    assert out.shape == (B2, L2, L2, out2), out.shape
    check(out, ref, 0.02, "tiled-f32")

    # Kernel-native lane-dense layout (no post-kernel transpose).
    out_boxy = jax.block_until_ready(biaffine_pallas(x, y, U, out_layout="boxy"))
    assert out_boxy.shape == (B2, out2, L2, L2), out_boxy.shape
    check(jnp.transpose(out_boxy, (0, 2, 3, 1)), ref, 0.02, "tiled-boxy")

    # Recommended bf16 compute path (f32 accumulation, f32 additive biases).
    out_bf16 = jax.block_until_ready(
        biaffine_pallas(x, y, U, compute_dtype=jnp.bfloat16))
    check(out_bf16, ref, 0.08, "tiled-bf16")

    print("KERNEL_OK")
</pallas_src>

<mosaic_0001>
module attributes {stable_mosaic.version = 11 : i64} {
  func.func @_biaffine_kernel(%arg0: i32, %arg1: i32, %arg2: i32, %arg3: memref<1x8x128xf32, #tpu.memory_space<vmem>>, %arg4: memref<1x8x128xf32, #tpu.memory_space<vmem>>, %arg5: memref<128x516xf32, #tpu.memory_space<vmem>>, %arg6: memref<1x516xf32, #tpu.memory_space<vmem>>, %arg7: memref<1x4x8x8xf32, #tpu.memory_space<vmem>>, %arg8: memref<8x516xf32, #tpu.memory_space<vmem>>) attributes {dimension_semantics = [#tpu.dimension_semantics<parallel>, #tpu.dimension_semantics<parallel>, #tpu.dimension_semantics<arbitrary>], iteration_bounds = array<i64: 2, 1, 1>, scalar_prefetch = 0 : i64, scratch_operands = 1 : i64, tpu.core_type = #tpu.core_type<tc>, window_params = [{transform_indices = @transform_0, window_bounds = array<i64: 1, 8, 128>}, {transform_indices = @transform_1, window_bounds = array<i64: 1, 8, 128>}, {pipeline_mode = #tpu.pipeline_mode<synchronous>, transform_indices = @transform_2, window_bounds = array<i64: 128, 516>}, {pipeline_mode = #tpu.pipeline_mode<synchronous>, transform_indices = @transform_3, window_bounds = array<i64: 1, 516>}, {transform_indices = @transform_4, window_bounds = array<i64: 1, 4, 8, 8>}]} {
    %c0_i32 = arith.constant 0 : i32
    %0 = arith.cmpi eq, %arg2, %c0_i32 : i32
    %1 = arith.extui %0 : i1 to i32
    %c0_i32_0 = arith.constant 0 : i32
    %2 = arith.cmpi ne, %1, %c0_i32_0 : i32
    scf.if %2 {
      %c0_25 = arith.constant 0 : index
      %c0_26 = arith.constant 0 : index
      %c0_27 = arith.constant 0 : index
      %38 = vector.load %arg3[%c0_25, %c0_26, %c0_27] : memref<1x8x128xf32, #tpu.memory_space<vmem>>, vector<1x8x128xf32>
      %39 = vector.shape_cast %38 : vector<1x8x128xf32> to vector<8x128xf32>
      %c0_28 = arith.constant 0 : index
      %c0_29 = arith.constant 0 : index
      %40 = vector.load %arg5[%c0_28, %c0_29] : memref<128x516xf32, #tpu.memory_space<vmem>>, vector<128x516xf32>
      %cst_30 = arith.constant dense<0.000000e+00> : vector<8x516xf32>
      %41 = tpu.matmul %39, %40, %cst_30 {dimension_numbers = #tpu.dot_dimension_numbers<[1], [0], [0], [1], [0, 0, 1, 1], [], []>} : vector<8x128xf32>, vector<128x516xf32>, vector<8x516xf32> -> vector<8x516xf32>
      %c0_31 = arith.constant 0 : index
      %c0_32 = arith.constant 0 : index
      %42 = vector.load %arg6[%c0_31, %c0_32] : memref<1x516xf32, #tpu.memory_space<vmem>>, vector<1x516xf32>
      %43 = vector.broadcast %42 : vector<1x516xf32> to vector<8x516xf32>
      %44 = arith.addf %41, %43 : vector<8x516xf32>
      %c0_33 = arith.constant 0 : index
      %c0_34 = arith.constant 0 : index
      %45 = vector.load %arg8[%c0_33, %c0_34] : memref<8x516xf32, #tpu.memory_space<vmem>>, vector<8x516xf32>
      tpu.vector_store %arg8[%c0_33, %c0_34], %44 {strides = array<i32>} : memref<8x516xf32, #tpu.memory_space<vmem>>, vector<8x516xf32>,
    } else {
    }
    %c0 = arith.constant 0 : index
    %c0_1 = arith.constant 0 : index
    %c0_2 = arith.constant 0 : index
    %3 = vector.load %arg4[%c0, %c0_1, %c0_2] : memref<1x8x128xf32, #tpu.memory_space<vmem>>, vector<1x8x128xf32>
    %4 = vector.shape_cast %3 : vector<1x8x128xf32> to vector<8x128xf32>
    %c0_3 = arith.constant 0 : index
    %c512 = arith.constant 512 : index
    %5 = vector.load %arg8[%c0_3, %c512] : memref<8x516xf32, #tpu.memory_space<vmem>>, vector<8x4xf32>
    %c0_4 = arith.constant 0 : index
    %c0_5 = arith.constant 0 : index
    %6 = vector.load %arg8[%c0_4, %c0_5] : memref<8x516xf32, #tpu.memory_space<vmem>>, vector<8x128xf32>
    %cst = arith.constant dense<0.000000e+00> : vector<8x8xf32>
    %7 = tpu.matmul %6, %4, %cst {dimension_numbers = #tpu.dot_dimension_numbers<[1], [1], [0], [0], [0, 0, 1, 0], [], []>} : vector<8x128xf32>, vector<8x128xf32>, vector<8x8xf32> -> vector<8x8xf32>
    %8 = vector.extract_strided_slice %5 {offsets = [0, 0], sizes = [8, 1], strides = [1, 1]} : vector<8x4xf32> to vector<8x1xf32>
    %9 = vector.broadcast %8 : vector<8x1xf32> to vector<8x8xf32>
    %10 = arith.addf %7, %9 : vector<8x8xf32>
    %c0_6 = arith.constant 0 : index
    %c0_7 = arith.constant 0 : index
    %c0_8 = arith.constant 0 : index
    %c0_9 = arith.constant 0 : index
    %11 = vector.load %arg7[%c0_6, %c0_7, %c0_8, %c0_9] : memref<1x4x8x8xf32, #tpu.memory_space<vmem>>, vector<1x1x8x8xf32>
    %12 = vector.shape_cast %11 : vector<1x1x8x8xf32> to vector<8x8xf32>
    %13 = vector.shape_cast %10 : vector<8x8xf32> to vector<1x1x8x8xf32>
    tpu.vector_store %arg7[%c0_6, %c0_7, %c0_8, %c0_9], %13 {strides = array<i32>} : memref<1x4x8x8xf32, #tpu.memory_space<vmem>>, vector<1x1x8x8xf32>,
    %c0_10 = arith.constant 0 : index
    %c128 = arith.constant 128 : index
    %14 = vector.load %arg8[%c0_10, %c128] : memref<8x516xf32, #tpu.memory_space<vmem>>, vector<8x128xf32>
    %cst_11 = arith.constant dense<0.000000e+00> : vector<8x8xf32>
    %15 = tpu.matmul %14, %4, %cst_11 {dimension_numbers = #tpu.dot_dimension_numbers<[1], [1], [0], [0], [0, 0, 1, 0], [], []>} : vector<8x128xf32>, vector<8x128xf32>, vector<8x8xf32> -> vector<8x8xf32>
    %16 = vector.extract_strided_slice %5 {offsets = [0, 1], sizes = [8, 1], strides = [1, 1]} : vector<8x4xf32> to vector<8x1xf32>
    %17 = vector.broadcast %16 : vector<8x1xf32> to vector<8x8xf32>
    %18 = arith.addf %15, %17 : vector<8x8xf32>
    %c0_12 = arith.constant 0 : index
    %c1 = arith.constant 1 : index
    %c0_13 = arith.constant 0 : index
    %c0_14 = arith.constant 0 : index
    %19 = vector.load %arg7[%c0_12, %c1, %c0_13, %c0_14] : memref<1x4x8x8xf32, #tpu.memory_space<vmem>>, vector<1x1x8x8xf32>
    %20 = vector.shape_cast %19 : vector<1x1x8x8xf32> to vector<8x8xf32>
    %21 = vector.shape_cast %18 : vector<8x8xf32> to vector<1x1x8x8xf32>
    tpu.vector_store %arg7[%c0_12, %c1, %c0_13, %c0_14], %21 {strides = array<i32>} : memref<1x4x8x8xf32, #tpu.memory_space<vmem>>, vector<1x1x8x8xf32>,
    %c0_15 = arith.constant 0 : index
    %c256 = arith.constant 256 : index
    %22 = vector.load %arg8[%c0_15, %c256] : memref<8x516xf32, #tpu.memory_space<vmem>>, vector<8x128xf32>
    %cst_16 = arith.constant dense<0.000000e+00> : vector<8x8xf32>
    %23 = tpu.matmul %22, %4, %cst_16 {dimension_numbers = #tpu.dot_dimension_numbers<[1], [1], [0], [0], [0, 0, 1, 0], [], []>} : vector<8x128xf32>, vector<8x128xf32>, vector<8x8xf32> -> vector<8x8xf32>
    %24 = vector.extract_strided_slice %5 {offsets = [0, 2], sizes = [8, 1], strides = [1, 1]} : vector<8x4xf32> to vector<8x1xf32>
    %25 = vector.broadcast %24 : vector<8x1xf32> to vector<8x8xf32>
    %26 = arith.addf %23, %25 : vector<8x8xf32>
    %c0_17 = arith.constant 0 : index
    %c2 = arith.constant 2 : index
    %c0_18 = arith.constant 0 : index
    %c0_19 = arith.constant 0 : index
    %27 = vector.load %arg7[%c0_17, %c2, %c0_18, %c0_19] : memref<1x4x8x8xf32, #tpu.memory_space<vmem>>, vector<1x1x8x8xf32>
    %28 = vector.shape_cast %27 : vector<1x1x8x8xf32> to vector<8x8xf32>
    %29 = vector.shape_cast %26 : vector<8x8xf32> to vector<1x1x8x8xf32>
    tpu.vector_store %arg7[%c0_17, %c2, %c0_18, %c0_19], %29 {strides = array<i32>} : memref<1x4x8x8xf32, #tpu.memory_space<vmem>>, vector<1x1x8x8xf32>,
    %c0_20 = arith.constant 0 : index
    %c384 = arith.constant 384 : index
    %30 = vector.load %arg8[%c0_20, %c384] : memref<8x516xf32, #tpu.memory_space<vmem>>, vector<8x128xf32>
    %cst_21 = arith.constant dense<0.000000e+00> : vector<8x8xf32>
    %31 = tpu.matmul %30, %4, %cst_21 {dimension_numbers = #tpu.dot_dimension_numbers<[1], [1], [0], [0], [0, 0, 1, 0], [], []>} : vector<8x128xf32>, vector<8x128xf32>, vector<8x8xf32> -> vector<8x8xf32>
    %32 = vector.extract_strided_slice %5 {offsets = [0, 3], sizes = [8, 1], strides = [1, 1]} : vector<8x4xf32> to vector<8x1xf32>
    %33 = vector.broadcast %32 : vector<8x1xf32> to vector<8x8xf32>
    %34 = arith.addf %31, %33 : vector<8x8xf32>
    %c0_22 = arith.constant 0 : index
    %c3 = arith.constant 3 : index
    %c0_23 = arith.constant 0 : index
    %c0_24 = arith.constant 0 : index
    %35 = vector.load %arg7[%c0_22, %c3, %c0_23, %c0_24] : memref<1x4x8x8xf32, #tpu.memory_space<vmem>>, vector<1x1x8x8xf32>
    %36 = vector.shape_cast %35 : vector<1x1x8x8xf32> to vector<8x8xf32>
    %37 = vector.shape_cast %34 : vector<8x8xf32> to vector<1x1x8x8xf32>
    tpu.vector_store %arg7[%c0_22, %c3, %c0_23, %c0_24], %37 {strides = array<i32>} : memref<1x4x8x8xf32, #tpu.memory_space<vmem>>, vector<1x1x8x8xf32>,
    return
  }
  func.func @transform_0(%arg0: i32, %arg1: i32, %arg2: i32) -> (i32, i32, i32) {
    %c0_i32 = arith.constant 0 : i32
    %c0_i32_0 = arith.constant 0 : i32
    return %arg0, %arg1, %c0_i32 : i32, i32, i32
  }
  func.func @transform_1(%arg0: i32, %arg1: i32, %arg2: i32) -> (i32, i32, i32) {
    %c0_i32 = arith.constant 0 : i32
    %c0_i32_0 = arith.constant 0 : i32
    return %arg0, %arg2, %c0_i32 : i32, i32, i32
  }
  func.func @transform_2(%arg0: i32, %arg1: i32, %arg2: i32) -> (i32, i32) {
    %c0_i32 = arith.constant 0 : i32
    %c0_i32_0 = arith.constant 0 : i32
    %c0_i32_1 = arith.constant 0 : i32
    return %c0_i32, %c0_i32_0 : i32, i32
  }
  func.func @transform_3(%arg0: i32, %arg1: i32, %arg2: i32) -> (i32, i32) {
    %c0_i32 = arith.constant 0 : i32
    %c0_i32_0 = arith.constant 0 : i32
    %c0_i32_1 = arith.constant 0 : i32
    return %c0_i32, %c0_i32_0 : i32, i32
  }
  func.func @transform_4(%arg0: i32, %arg1: i32, %arg2: i32) -> (i32, i32, i32, i32) {
    %c0_i32 = arith.constant 0 : i32
    %c0_i32_0 = arith.constant 0 : i32
    return %arg0, %c0_i32, %arg1, %arg2 : i32, i32, i32, i32
  }
}

</mosaic_0001>

<llo_original>
// kernel: tpu_custom_call.1
$region0: #{tpu_custom_call.1}
  #allocation0 [shape = 'u32[]', space=smem, size = 0x4, offset = 0x4, fixed_abs, tag = 'smem constant byte address 0x4 - core index']
  #allocation1 [shape = 'u32[144,128]{1,0:T(1,128)}', space=vmem, size = 0x12000, scoped, tag = 'internal scratch']
  #allocation2 [shape = 'f32[8,516]{1,0:T(8,128)}', space=vmem, size = 0x5000, scoped, tag = 'scratch operand']
  %s0 = inlined_call_operand.vmem [shape: f32[2,8,128], index: 0, kind: input, shape index: {}]
  %s1 = inlined_call_operand.vmem [shape: f32[2,8,128], index: 1, kind: input, shape index: {}]
  %s2 = inlined_call_operand.vmem [shape: f32[128,516], index: 2, kind: input, shape index: {}]
  %s3 = inlined_call_operand.vmem [shape: f32[1,516], index: 3, kind: input, shape index: {}]
  %s4 = inlined_call_operand.hbm [shape: f32[2,4,8,8], index: 4, kind: output, shape index: {}]
  %s5 = sld [smem:[#allocation0]]
  $region53: #{tpu_custom_call.1} parent=0
    _
  %s7 = ssub.s32 1, %s5
  %s8 = scalar_select 0, %s7, %s5
  $region1: #{tpu_custom_call.1} parent=0
    #allocation3 [shape = 'u8[32768]{0}', space=vmem, size = 0x8000, scoped, tag = 'output window, operand 0']
    #allocation4 [shape = 's32[2]{0}', space=sflag, size = 0x8, scoped, tag = 'scoped memory for tpu_custom_call.1']
    %9 = vsyncpa [#allocation4], 0
    %s10 = scalar_lea.sflag [#allocation4], 1
    %11 = vsyncpa %s10, 0
    loop: start=0, step=1, limit=4
    $region2: #{tpu_custom_call.1} parent=1 // loop_pre_header
      _
    $region3: #{tpu_custom_call.1} parent=1 // loop_header
      %s13 = sphi 0, %s17
      %p14 = scmp.ge.s32.totalorder %s13, 4
      %s20 = sphi 0, %s39
      %s21 = sphi 0, %s35
      %s22 = sphi 0, %s31
      %s23 = sphi 0, %s20
      %s24 = sphi 0, %s21
      %s25 = sphi 0, %s22
      %s26 = sphi 0, %s23
      %s27 = sphi 0, %s24
      %s28 = sphi 0, %s25
      %s44 = sphi 0, %s46
      %s47 = sphi 0, %s44
      %s48 = sphi 0, %s47
      %s64 = sphi 0, %s48
      %s72 = sphi 0, %s74
      %s75 = sphi 0, %s72
      %s76 = sphi 0, %s75
      %s92 = sphi 0, %s76
      %s96 = sphi 0, %s96
      %s98 = sphi 0, %s96
      %s99 = sphi 0, %s98
      %s113 = sphi 0, %s99
      %s117 = sphi 0, %s117
      %s119 = sphi 0, %s117
      %s120 = sphi 0, %s119
      %s134 = sphi 0, %s120
      %s144 = sphi 0, %s146
      %s147 = sphi 0, %s144
      %s148 = sphi 0, %s147
      %s164 = sphi 0, %s148
    $region4: #{tpu_custom_call.1} parent=1 // loop_header_branch
      %16 = sbr.rel (%p14) target = $region8
    $region5: #{tpu_custom_call.1} parent=1 // loop_body
      %s18 = ssub.s32 %s13, 1
      %s19 = ssub.s32 %s13, 2
      %s29 = sadd.s32 1, %s22
      %p30 = scmp.ge.s32.totalorder %s29, 1
      %s31 = scalar_select %p30, 0, %s29
      %s32 = sadd.s32 1, %s21
      %s33 = scalar_select %p30, %s32, %s21
      %p34 = scmp.ge.s32.totalorder %s33, 1
      %s35 = scalar_select %p34, 0, %s33
      %s36 = sadd.s32 1, %s20
      %s37 = scalar_select %p34, %s36, %s20
      %p38 = scmp.ge.s32.totalorder %s37, 2
      %s39 = scalar_select %p38, 0, %s37
      %s40 = ssub.s32 %s20, %s39
      %s41 = ssub.s32 %s21, %s35
      %s42 = sor.u32 %s40, %s41
      %p43 = scmp.eq.s32.totalorder %s42, 0
      %s45 = sadd.s32 %s44, 1
      %s46 = scalar_select %p43, %s44, %s45
      %p49 = pneg %p43
      %p50 = scmp.eq.s32.totalorder %s13, 1
      %p51 = por %p49, %p50
      %p52 = scmp.ne.s32.totalorder %s44, %s47
      %p53 = scmp.eq.s32.totalorder %s13, 0
      %p54 = por %p52, %p53
      %p55 = scmp.ne.s32.totalorder %s44, %s47
      %p56 = scmp.eq.s32.totalorder %s18, 1
      %p57 = por %p55, %p56
      %p58 = scmp.ne.s32.totalorder %s47, %s48
      %p59 = scmp.eq.s32.totalorder %s18, 0
      %p60 = por %p58, %p59
      %p61 = scmp.ne.s32.totalorder %s47, %s48
      %p62 = scmp.eq.s32.totalorder %s19, 1
      %p63 = por %p61, %p62
      %p65 = scmp.ne.s32.totalorder %s48, %s64
      %p66 = scmp.eq.s32.totalorder %s19, 0
      %p67 = por %p65, %p66
      %s68 = ssub.s32 %s20, %s39
      %s69 = ssub.s32 %s22, %s31
      %s70 = sor.u32 %s68, %s69
      %p71 = scmp.eq.s32.totalorder %s70, 0
      %s73 = sadd.s32 %s72, 1
      %s74 = scalar_select %p71, %s72, %s73
      %p77 = pneg %p71
      %p78 = scmp.eq.s32.totalorder %s13, 1
      %p79 = por %p77, %p78
      %p80 = scmp.ne.s32.totalorder %s72, %s75
      %p81 = scmp.eq.s32.totalorder %s13, 0
      %p82 = por %p80, %p81
      %p83 = scmp.ne.s32.totalorder %s72, %s75
      %p84 = scmp.eq.s32.totalorder %s18, 1
      %p85 = por %p83, %p84
      %p86 = scmp.ne.s32.totalorder %s75, %s76
      %p87 = scmp.eq.s32.totalorder %s18, 0
      %p88 = por %p86, %p87
      %p89 = scmp.ne.s32.totalorder %s75, %s76
      %p90 = scmp.eq.s32.totalorder %s19, 1
      %p91 = por %p89, %p90
      %p93 = scmp.ne.s32.totalorder %s76, %s92
      %p94 = scmp.eq.s32.totalorder %s19, 0
      %p95 = por %p93, %p94
      %s97 = sadd.s32 %s96, 1
      %p100 = scmp.eq.s32.totalorder %s13, 1
      %p101 = scmp.ne.s32.totalorder %s96, %s98
      %p102 = scmp.eq.s32.totalorder %s13, 0
      %p103 = por %p101, %p102
      %p104 = scmp.ne.s32.totalorder %s96, %s98
      %p105 = scmp.eq.s32.totalorder %s18, 1
      %p106 = por %p104, %p105
      %p107 = scmp.ne.s32.totalorder %s98, %s99
      %p108 = scmp.eq.s32.totalorder %s18, 0
      %p109 = por %p107, %p108
      %p110 = scmp.ne.s32.totalorder %s98, %s99
      %p111 = scmp.eq.s32.totalorder %s19, 1
      %p112 = por %p110, %p111
      %p114 = scmp.ne.s32.totalorder %s99, %s113
      %p115 = scmp.eq.s32.totalorder %s19, 0
      %p116 = por %p114, %p115
      %s118 = sadd.s32 %s117, 1
      %p121 = scmp.eq.s32.totalorder %s13, 1
      %p122 = scmp.ne.s32.totalorder %s117, %s119
      %p123 = scmp.eq.s32.totalorder %s13, 0
      %p124 = por %p122, %p123
      %p125 = scmp.ne.s32.totalorder %s117, %s119
      %p126 = scmp.eq.s32.totalorder %s18, 1
      %p127 = por %p125, %p126
      %p128 = scmp.ne.s32.totalorder %s119, %s120
      %p129 = scmp.eq.s32.totalorder %s18, 0
      %p130 = por %p128, %p129
      %p131 = scmp.ne.s32.totalorder %s119, %s120
      %p132 = scmp.eq.s32.totalorder %s19, 1
      %p133 = por %p131, %p132
      %p135 = scmp.ne.s32.totalorder %s120, %s134
      %p136 = scmp.eq.s32.totalorder %s19, 0
      %p137 = por %p135, %p136
      %s138 = ssub.s32 %s20, %s39
      %s139 = ssub.s32 %s21, %s35
      %s140 = sor.u32 %s138, %s139
      %s141 = ssub.s32 %s22, %s31
      %s142 = sor.u32 %s140, %s141
      %p143 = scmp.eq.s32.totalorder %s142, 0
      %s145 = sadd.s32 %s144, 1
      %s146 = scalar_select %p143, %s144, %s145
      %p149 = pneg %p143
      %p150 = scmp.eq.s32.totalorder %s13, 1
      %p151 = por %p149, %p150
      %p152 = scmp.ne.s32.totalorder %s144, %s147
      %p153 = scmp.eq.s32.totalorder %s13, 0
      %p154 = por %p152, %p153
      %p155 = scmp.ne.s32.totalorder %s144, %s147
      %p156 = scmp.eq.s32.totalorder %s18, 1
      %p157 = por %p155, %p156
      %p158 = scmp.ne.s32.totalorder %s147, %s148
      %p159 = scmp.eq.s32.totalorder %s18, 0
      %p160 = por %p158, %p159
      %p161 = scmp.ne.s32.totalorder %s147, %s148
      %p162 = scmp.eq.s32.totalorder %s19, 1
      %p163 = por %p161, %p162
      %p165 = scmp.ne.s32.totalorder %s148, %s164
      %p166 = scmp.eq.s32.totalorder %s19, 0
      %p167 = por %p165, %p166
      %p168 = scmp.le.s32.totalorder 1, %s13
      %p169 = scmp.lt.s32.totalorder %s13, 3
      %p170 = pnand %p168, %p169
      %p171 = pneg %p170
      // Predicated region
      $region9: #{tpu_custom_call.1} parent=5 // pred_check
        _
      $region10: #{tpu_custom_call.1} parent=5 // pred_check_branch
        %173 = sbr.rel (%p170) target = $region12
      $region11: #{tpu_custom_call.1} parent=5 // pred_region
        %s174 = ssub.s32 %s13, 1
        // Predicated region
        $region13: #{tpu_custom_call.1} parent=11 // pred_check
          %p175 = pneg %p109
        $region14: #{tpu_custom_call.1} parent=11 // pred_check_branch
          %177 = sbr.rel (%p175) target = $region16
        $region15: #{tpu_custom_call.1} parent=11 // pred_region
          _
        $region16: #{tpu_custom_call.1} parent=11 // pred_fallthru
          _
        // Predicated region
        $region17: #{tpu_custom_call.1} parent=11 // pred_check
          %p178 = pneg %p130
        $region18: #{tpu_custom_call.1} parent=11 // pred_check_branch
          %180 = sbr.rel (%p178) target = $region20
        $region19: #{tpu_custom_call.1} parent=11 // pred_region
          _
        $region20: #{tpu_custom_call.1} parent=11 // pred_fallthru
          _
      $region12: #{tpu_custom_call.1} parent=5 // pred_fallthru
        _
      %p181 = scmp.lt.s32.totalorder %s13, 2
      // Predicated region
      $region21: #{tpu_custom_call.1} parent=5 // pred_check
        %p182 = pneg %p181
      $region22: #{tpu_custom_call.1} parent=5 // pred_check_branch
        %184 = sbr.rel (%p182) target = $region24
      $region23: #{tpu_custom_call.1} parent=5 // pred_region
        // Predicated region
        $region25: #{tpu_custom_call.1} parent=23 // pred_check
          %p185 = pneg %p54
        $region26: #{tpu_custom_call.1} parent=23 // pred_check_branch
          %187 = sbr.rel (%p185) target = $region28
        $region27: #{tpu_custom_call.1} parent=23 // pred_region
          %p188 = scmp.lt.s32.totalorder %s20, 1
          %s189 = scalar_select %p188, %s20, 1
          %p190 = scmp.lt.s32.totalorder %s21, 0
          %s191 = scalar_select %p190, %s21, 0
          %s192 = sadd.s32 %s191, %s189
          %s193 = smul.addr %s192, 8
          %s194 = scalar_lea.vmem %s0, %s193
        $region28: #{tpu_custom_call.1} parent=23 // pred_fallthru
          _
        // Predicated region
        $region29: #{tpu_custom_call.1} parent=23 // pred_check
          %p195 = pneg %p82
        $region30: #{tpu_custom_call.1} parent=23 // pred_check_branch
          %197 = sbr.rel (%p195) target = $region32
        $region31: #{tpu_custom_call.1} parent=23 // pred_region
          %p198 = scmp.lt.s32.totalorder %s20, 1
          %s199 = scalar_select %p198, %s20, 1
          %p200 = scmp.lt.s32.totalorder %s22, 0
          %s201 = scalar_select %p200, %s22, 0
          %s202 = sadd.s32 %s201, %s199
          %s203 = smul.addr %s202, 8
          %s204 = scalar_lea.vmem %s1, %s203
        $region32: #{tpu_custom_call.1} parent=23 // pred_fallthru
          _
      $region24: #{tpu_custom_call.1} parent=5 // pred_fallthru
        _
      %p205 = scmp.le.s32.totalorder 1, %s13
      %p206 = scmp.lt.s32.totalorder %s13, 3
      %p207 = pnand %p205, %p206
      %p208 = pneg %p207
      // Predicated region
      $region33: #{tpu_custom_call.1} parent=5 // pred_check
        _
      $region34: #{tpu_custom_call.1} parent=5 // pred_check_branch
        %210 = sbr.rel (%p207) target = $region36
      $region35: #{tpu_custom_call.1} parent=5 // pred_region
        %s211 = ssub.s32 %s13, 1
        %p212 = scmp.lt.s32.totalorder %s23, 1
        %s213 = scalar_select %p212, %s23, 1
        %p214 = scmp.lt.s32.totalorder %s24, 0
        %s215 = scalar_select %p214, %s24, 0
        %s216 = sadd.s32 %s215, %s213
        %s217 = smul.addr %s216, 8
        %s218 = scalar_lea.vmem %s0, %s217
        %p219 = pneg %p60
        %p220 = pneg %p57
        %p221 = scmp.lt.s32.totalorder %s23, 1
        %s222 = scalar_select %p221, %s23, 1
        %p223 = scmp.lt.s32.totalorder %s25, 0
        %s224 = scalar_select %p223, %s25, 0
        %s225 = sadd.s32 %s224, %s222
        %s226 = smul.addr %s225, 8
        %s227 = scalar_lea.vmem %s1, %s226
        %p228 = pneg %p88
        %p229 = pneg %p85
        %p230 = pneg %p109
        %p231 = pneg %p106
        %p232 = pneg %p130
        %p233 = pneg %p127
        %p234 = pneg %p160
        %p235 = pneg %p157
        %s236 = sand.u32 %s147, 1
        %s237 = scalar_lea.sflag [#allocation4], %s236
        %s238 = sand.u32 %s147, 1
        %s239 = smul.addr %s238, 32
        %s240 = scalar_lea.vmem [#allocation3], %s239
        %p241 = scmp.lt.s32.totalorder %s23, 1
        %s242 = scalar_select %p241, %s23, 1
        %p243 = scmp.lt.s32.totalorder %s24, 0
        %s244 = scalar_select %p243, %s24, 0
        %s245 = sadd.s32 %s244, %s242
        %s246 = smul.addr %s245, 8
        %s247 = scalar_lea.vmem %s0, %s246
        %p248 = scmp.lt.s32.totalorder %s23, 1
        %s249 = scalar_select %p248, %s23, 1
        %p250 = scmp.lt.s32.totalorder %s25, 0
        %s251 = scalar_select %p250, %s25, 0
        %s252 = sadd.s32 %s251, %s249
        %s253 = smul.addr %s252, 8
        %s254 = scalar_lea.vmem %s1, %s253
        %p255 = scmp.eq.s32.totalorder %s25, 0
        // Predicated region
        $region37: #{tpu_custom_call.1} parent=35 // pred_check
          %p256 = pneg %p255
        $region38: #{tpu_custom_call.1} parent=35 // pred_check_branch
          %258 = sbr.rel (%p256) target = $region40
        $region39: #{tpu_custom_call.1} parent=35 // pred_region
          %v259 = vld [vmem:[%s247] sm:$0xff]
          %v260 = vld [vmem:[%s2] sm:$0xff]
          %v261 = vld [vmem:[%s2 + $0x8] sm:$0xff]
          %v262 = vld [vmem:[%s2 + $0x10] sm:$0xff]
          %v263 = vld [vmem:[%s2 + $0x18] sm:$0xff]
          %v264 = vld [vmem:[%s2 + $0x20] sm:$0xff]
          %v265 = vld [vmem:[%s2 + $0x28] sm:$0xff]
          %v266 = vld [vmem:[%s2 + $0x30] sm:$0xff]
          %v267 = vld [vmem:[%s2 + $0x38] sm:$0xff]
          %v268 = vld [vmem:[%s2 + $0x40] sm:$0xff]
          %v269 = vld [vmem:[%s2 + $0x48] sm:$0xff]
          %v270 = vld [vmem:[%s2 + $0x50] sm:$0xff]
          %v271 = vld [vmem:[%s2 + $0x58] sm:$0xff]
          %v272 = vld [vmem:[%s2 + $0x60] sm:$0xff]
          %v273 = vld [vmem:[%s2 + $0x68] sm:$0xff]
          %v274 = vld [vmem:[%s2 + $0x70] sm:$0xff]
          %v275 = vld [vmem:[%s2 + $0x78] sm:$0xff]
          %v276 = vld [vmem:[%s2 + $0x80] sm:$0xff]
          %v277 = vld [vmem:[%s2 + $0x88] sm:$0xff]
          %v278 = vld [vmem:[%s2 + $0x90] sm:$0xff]
          %v279 = vld [vmem:[%s2 + $0x98] sm:$0xff]
          %v280 = vld [vmem:[%s2 + $0xa0] sm:$0xff]
          %v281 = vld [vmem:[%s2 + $0xa8] sm:$0xff]
          %v282 = vld [vmem:[%s2 + $0xb0] sm:$0xff]
          %v283 = vld [vmem:[%s2 + $0xb8] sm:$0xff]
          %v284 = vld [vmem:[%s2 + $0xc0] sm:$0xff]
          %v285 = vld [vmem:[%s2 + $0xc8] sm:$0xff]
          %v286 = vld [vmem:[%s2 + $0xd0] sm:$0xff]
          %v287 = vld [vmem:[%s2 + $0xd8] sm:$0xff]
          %v288 = vld [vmem:[%s2 + $0xe0] sm:$0xff]
          %v289 = vld [vmem:[%s2 + $0xe8] sm:$0xff]
          %v290 = vld [vmem:[%s2 + $0xf0] sm:$0xff]
          %v291 = vld [vmem:[%s2 + $0xf8] sm:$0xff]
          %v292 = vld [vmem:[%s2 + $0x100] sm:$0xff]
          %v293 = vld [vmem:[%s2 + $0x108] sm:$0xff]
          %v294 = vld [vmem:[%s2 + $0x110] sm:$0xff]
          %v295 = vld [vmem:[%s2 + $0x118] sm:$0xff]
          %v296 = vld [vmem:[%s2 + $0x120] sm:$0xff]
          %v297 = vld [vmem:[%s2 + $0x128] sm:$0xff]
          %v298 = vld [vmem:[%s2 + $0x130] sm:$0xff]
          %v299 = vld [vmem:[%s2 + $0x138] sm:$0xff]
          %v300 = vld [vmem:[%s2 + $0x140] sm:$0xff]
          %v301 = vld [vmem:[%s2 + $0x148] sm:$0xff]
          %v302 = vld [vmem:[%s2 + $0x150] sm:$0xff]
          %v303 = vld [vmem:[%s2 + $0x158] sm:$0xff]
          %v304 = vld [vmem:[%s2 + $0x160] sm:$0xff]
          %v305 = vld [vmem:[%s2 + $0x168] sm:$0xff]
          %v306 = vld [vmem:[%s2 + $0x170] sm:$0xff]
          %v307 = vld [vmem:[%s2 + $0x178] sm:$0xff]
          %v308 = vld [vmem:[%s2 + $0x180] sm:$0xff]
          %v309 = vld [vmem:[%s2 + $0x188] sm:$0xff]
          %v310 = vld [vmem:[%s2 + $0x190] sm:$0xff]
          %v311 = vld [vmem:[%s2 + $0x198] sm:$0xff]
          %v312 = vld [vmem:[%s2 + $0x1a0] sm:$0xff]
          %v313 = vld [vmem:[%s2 + $0x1a8] sm:$0xff]
          %v314 = vld [vmem:[%s2 + $0x1b0] sm:$0xff]
          %v315 = vld [vmem:[%s2 + $0x1b8] sm:$0xff]
          %v316 = vld [vmem:[%s2 + $0x1c0] sm:$0xff]
          %v317 = vld [vmem:[%s2 + $0x1c8] sm:$0xff]
          %v318 = vld [vmem:[%s2 + $0x1d0] sm:$0xff]
          %v319 = vld [vmem:[%s2 + $0x1d8] sm:$0xff]
          %v320 = vld [vmem:[%s2 + $0x1e0] sm:$0xff]
          %v321 = vld [vmem:[%s2 + $0x1e8] sm:$0xff]
          %v322 = vld [vmem:[%s2 + $0x1f0] sm:$0xff]
          %v323 = vld [vmem:[%s2 + $0x1f8] sm:$0xff]
          %v324 = vld [vmem:[%s2 + $0x200] sm:$0xff]
          %v325 = vld [vmem:[%s2 + $0x208] sm:$0xff]
          %v326 = vld [vmem:[%s2 + $0x210] sm:$0xff]
          %v327 = vld [vmem:[%s2 + $0x218] sm:$0xff]
          %v328 = vld [vmem:[%s2 + $0x220] sm:$0xff]
          %v329 = vld [vmem:[%s2 + $0x228] sm:$0xff]
          %v330 = vld [vmem:[%s2 + $0x230] sm:$0xff]
          %v331 = vld [vmem:[%s2 + $0x238] sm:$0xff]
          %v332 = vld [vmem:[%s2 + $0x240] sm:$0xff]
          %v333 = vld [vmem:[%s2 + $0x248] sm:$0xff]
          %v334 = vld [vmem:[%s2 + $0x250] sm:$0xff]
          %v335 = vld [vmem:[%s2 + $0x258] sm:$0xff]
          %v336 = vld [vmem:[%s2 + $0x260] sm:$0xff]
          %v337 = vld [vmem:[%s2 + $0x268] sm:$0xff]
          %v338 = vld [vmem:[%s2 + $0x270] sm:$0xff]
          %v339 = vld [vmem:[%s2 + $0x278] sm:$0xff]
          %v340 = vld [vmem:[%s3] sm:$0x1f]
          %v342 = vlaneseq
          %v343 = vshrl.u32 %v342, 7
          %v344 = vsub.s32 0, %v343
          %v345 = vrot.slane %v340, %v344
          %v346 = vlaneseq
          %v347 = vshrl.u32 %v346, 7
          %v348 = vsub.s32 1, %v347
          %v349 = vrot.slane %v340, %v348
          %v350 = vlaneseq
          %v351 = vshrl.u32 %v350, 7
          %v352 = vsub.s32 2, %v351
          %v353 = vrot.slane %v340, %v352
          %v354 = vlaneseq
          %v355 = vshrl.u32 %v354, 7
          %v356 = vsub.s32 3, %v355
          %v357 = vrot.slane %v340, %v356
          %v358 = vlaneseq
          %v359 = vshrl.u32 %v358, 7
          %v360 = vsub.s32 4, %v359
          %v361 = vrot.slane %v340, %v360
          %367 = vmatprep.subr.mxu0 %v261
          %368 = vmatpush1.msra.mxu0 %v260
          %369 = vmatprep.subr.mxu0 %v266
          %370 = vmatpush1.msra.mxu0 %v265
          %371 = vmatprep.subr.mxu0 %v271
          %372 = vmatpush1.msra.mxu0 %v270
          %373 = vmatprep.subr.mxu0 %v276
          %374 = vmatpush1.msra.mxu0 %v275
          %375 = vmatprep.subr.mxu0 %v281
          %376 = vmatpush1.msra.mxu0 %v280
          %377 = vmatprep.subr.mxu0 %v286
          %378 = vmatpush1.msra.mxu0 %v285
          %379 = vmatprep.subr.mxu0 %v291
          %380 = vmatpush1.msra.mxu0 %v290
          %381 = vmatprep.subr.mxu0 %v296
          %382 = vmatpush1.msra.mxu0 %v295
          %383 = vmatprep.subr.mxu0 %v301
          %384 = vmatpush1.msra.mxu0 %v300
          %385 = vmatprep.subr.mxu0 %v306
          %386 = vmatpush1.msra.mxu0 %v305
          %387 = vmatprep.subr.mxu0 %v311
          %388 = vmatpush1.msra.mxu0 %v310
          %389 = vmatprep.subr.mxu0 %v316
          %390 = vmatpush1.msra.mxu0 %v315
          %391 = vmatprep.subr.mxu0 %v321
          %392 = vmatpush1.msra.mxu0 %v320
          %393 = vmatprep.subr.mxu0 %v326
          %394 = vmatpush1.msra.mxu0 %v325
          %395 = vmatprep.subr.mxu0 %v331
          %396 = vmatpush1.msra.mxu0 %v330
          %397 = vmatprep.subr.mxu0 %v336
          %398 = vmatpush1.msra.mxu0 %v335
          %399 = vmatprep.subr.mxu0 0.0
          %400 = vmatpush1.msra.mxu0 0.0
          %401 = vmatprep.subr.mxu0 0.0
          %402 = vmatpush1.msra.mxu0 0.0
          %403 = vmatprep.subr.mxu0 0.0
          %404 = vmatpush1.msra.mxu0 0.0
          %405 = vmatprep.subr.mxu0 0.0
          %406 = vmatpush1.msra.mxu0 0.0
          %407 = vmatprep.subr.mxu0 0.0
          %408 = vmatpush1.msra.mxu0 0.0
          %409 = vmatprep.subr.mxu0 0.0
          %410 = vmatpush1.msra.mxu0 0.0
          %411 = vmatprep.subr.mxu0 0.0
          %412 = vmatpush1.msra.mxu0 0.0
          %413 = vmatprep.subr.mxu0 0.0
          %414 = vmatpush1.msra.mxu0 0.0
          %415 = vmatprep.subr.mxu0 0.0
          %416 = vmatpush1.msra.mxu0 0.0
          %417 = vmatprep.subr.mxu0 0.0
          %418 = vmatpush1.msra.mxu0 0.0
          %419 = vmatprep.subr.mxu0 0.0
          %420 = vmatpush1.msra.mxu0 0.0
          %421 = vmatprep.subr.mxu0 0.0
          %422 = vmatpush1.msra.mxu0 0.0
          %423 = vmatprep.subr.mxu0 0.0
          %424 = vmatpush1.msra.mxu0 0.0
          %425 = vmatprep.subr.mxu0 0.0
          %426 = vmatpush1.msra.mxu0 0.0
          %427 = vmatprep.subr.mxu0 0.0
          %428 = vmatpush1.msra.mxu0 0.0
          %429 = vmatprep.subr.mxu0 0.0
          %430 = vmatpush1.msra.mxu0 0.0
          %431 = vmatprep.mubr.f32.mxu0 0.0
          %432 = vmatmul.mubr.f32.gmra.mrb[0].mxu0 %v259
          %v433 = vpop.f32.mrb[0].mxu0
          %v434 = vadd.f32 %v345, %v433
          %v435 = vpop.f32.mrb[0].mxu0
          %v436 = vadd.f32 %v349, %v435
          %437 = vdwg.mxu0
          %438 = vmatprep.subr.mxu0 %v263
          %439 = vmatpush1.msra.mxu0 %v262
          %440 = vmatprep.subr.mxu0 %v268
          %441 = vmatpush1.msra.mxu0 %v267
          %442 = vmatprep.subr.mxu0 %v273
          %443 = vmatpush1.msra.mxu0 %v272
          %444 = vmatprep.subr.mxu0 %v278
          %445 = vmatpush1.msra.mxu0 %v277
          %446 = vmatprep.subr.mxu0 %v283
          %447 = vmatpush1.msra.mxu0 %v282
          %448 = vmatprep.subr.mxu0 %v288
          %449 = vmatpush1.msra.mxu0 %v287
          %450 = vmatprep.subr.mxu0 %v293
          %451 = vmatpush1.msra.mxu0 %v292
          %452 = vmatprep.subr.mxu0 %v298
          %453 = vmatpush1.msra.mxu0 %v297
          %454 = vmatprep.subr.mxu0 %v303
          %455 = vmatpush1.msra.mxu0 %v302
          %456 = vmatprep.subr.mxu0 %v308
          %457 = vmatpush1.msra.mxu0 %v307
          %458 = vmatprep.subr.mxu0 %v313
          %459 = vmatpush1.msra.mxu0 %v312
          %460 = vmatprep.subr.mxu0 %v318
          %461 = vmatpush1.msra.mxu0 %v317
          %462 = vmatprep.subr.mxu0 %v323
          %463 = vmatpush1.msra.mxu0 %v322
          %464 = vmatprep.subr.mxu0 %v328
          %465 = vmatpush1.msra.mxu0 %v327
          %466 = vmatprep.subr.mxu0 %v333
          %467 = vmatpush1.msra.mxu0 %v332
          %468 = vmatprep.subr.mxu0 %v338
          %469 = vmatpush1.msra.mxu0 %v337
          %470 = vmatprep.subr.mxu0 0.0
          %471 = vmatpush1.msra.mxu0 0.0
          %472 = vmatprep.subr.mxu0 0.0
          %473 = vmatpush1.msra.mxu0 0.0
          %474 = vmatprep.subr.mxu0 0.0
          %475 = vmatpush1.msra.mxu0 0.0
          %476 = vmatprep.subr.mxu0 0.0
          %477 = vmatpush1.msra.mxu0 0.0
          %478 = vmatprep.subr.mxu0 0.0
          %479 = vmatpush1.msra.mxu0 0.0
          %480 = vmatprep.subr.mxu0 0.0
          %481 = vmatpush1.msra.mxu0 0.0
          %482 = vmatprep.subr.mxu0 0.0
          %483 = vmatpush1.msra.mxu0 0.0
          %484 = vmatprep.subr.mxu0 0.0
          %485 = vmatpush1.msra.mxu0 0.0
          %486 = vmatprep.subr.mxu0 0.0
          %487 = vmatpush1.msra.mxu0 0.0
          %488 = vmatprep.subr.mxu0 0.0
          %489 = vmatpush1.msra.mxu0 0.0
          %490 = vmatprep.subr.mxu0 0.0
          %491 = vmatpush1.msra.mxu0 0.0
          %492 = vmatprep.subr.mxu0 0.0
          %493 = vmatpush1.msra.mxu0 0.0
          %494 = vmatprep.subr.mxu0 0.0
          %495 = vmatpush1.msra.mxu0 0.0
          %496 = vmatprep.subr.mxu0 0.0
          %497 = vmatpush1.msra.mxu0 0.0
          %498 = vmatprep.subr.mxu0 0.0
          %499 = vmatpush1.msra.mxu0 0.0
          %500 = vmatprep.subr.mxu0 0.0
          %501 = vmatpush1.msra.mxu0 0.0
          %502 = vmatprep.mubr.f32.mxu0 0.0
          %503 = vmatmul.mubr.f32.gmra.mrb[0].mxu0 %v259
          %v504 = vpop.f32.mrb[0].mxu0
          %v505 = vadd.f32 %v353, %v504
          %v506 = vpop.f32.mrb[0].mxu0
          %v507 = vadd.f32 %v357, %v506
          %508 = vdwg.mxu0
          %509 = vmatprep.subr.mxu0 0.0
          %510 = vmatpush1.msra.mxu0 %v264
          %511 = vmatprep.subr.mxu0 0.0
          %512 = vmatpush1.msra.mxu0 %v269
          %513 = vmatprep.subr.mxu0 0.0
          %514 = vmatpush1.msra.mxu0 %v274
          %515 = vmatprep.subr.mxu0 0.0
          %516 = vmatpush1.msra.mxu0 %v279
          %517 = vmatprep.subr.mxu0 0.0
          %518 = vmatpush1.msra.mxu0 %v284
          %519 = vmatprep.subr.mxu0 0.0
          %520 = vmatpush1.msra.mxu0 %v289
          %521 = vmatprep.subr.mxu0 0.0
          %522 = vmatpush1.msra.mxu0 %v294
          %523 = vmatprep.subr.mxu0 0.0
          %524 = vmatpush1.msra.mxu0 %v299
          %525 = vmatprep.subr.mxu0 0.0
          %526 = vmatpush1.msra.mxu0 %v304
          %527 = vmatprep.subr.mxu0 0.0
          %528 = vmatpush1.msra.mxu0 %v309
          %529 = vmatprep.subr.mxu0 0.0
          %530 = vmatpush1.msra.mxu0 %v314
          %531 = vmatprep.subr.mxu0 0.0
          %532 = vmatpush1.msra.mxu0 %v319
          %533 = vmatprep.subr.mxu0 0.0
          %534 = vmatpush1.msra.mxu0 %v324
          %535 = vmatprep.subr.mxu0 0.0
          %536 = vmatpush1.msra.mxu0 %v329
          %537 = vmatprep.subr.mxu0 0.0
          %538 = vmatpush1.msra.mxu0 %v334
          %539 = vmatprep.subr.mxu0 0.0
          %540 = vmatpush1.msra.mxu0 %v339
          %541 = vmatprep.subr.mxu0 0.0
          %542 = vmatpush1.msra.mxu0 0.0
          %543 = vmatprep.subr.mxu0 0.0
          %544 = vmatpush1.msra.mxu0 0.0
          %545 = vmatprep.subr.mxu0 0.0
          %546 = vmatpush1.msra.mxu0 0.0
          %547 = vmatprep.subr.mxu0 0.0
          %548 = vmatpush1.msra.mxu0 0.0
          %549 = vmatprep.subr.mxu0 0.0
          %550 = vmatpush1.msra.mxu0 0.0
          %551 = vmatprep.subr.mxu0 0.0
          %552 = vmatpush1.msra.mxu0 0.0
          %553 = vmatprep.subr.mxu0 0.0
          %554 = vmatpush1.msra.mxu0 0.0
          %555 = vmatprep.subr.mxu0 0.0
          %556 = vmatpush1.msra.mxu0 0.0
          %557 = vmatprep.subr.mxu0 0.0
          %558 = vmatpush1.msra.mxu0 0.0
          %559 = vmatprep.subr.mxu0 0.0
          %560 = vmatpush1.msra.mxu0 0.0
          %561 = vmatprep.subr.mxu0 0.0
          %562 = vmatpush1.msra.mxu0 0.0
          %563 = vmatprep.subr.mxu0 0.0
          %564 = vmatpush1.msra.mxu0 0.0
          %565 = vmatprep.subr.mxu0 0.0
          %566 = vmatpush1.msra.mxu0 0.0
          %567 = vmatprep.subr.mxu0 0.0
          %568 = vmatpush1.msra.mxu0 0.0
          %569 = vmatprep.subr.mxu0 0.0
          %570 = vmatpush1.msra.mxu0 0.0
          %571 = vmatprep.subr.mxu0 0.0
          %572 = vmatpush1.msra.mxu0 0.0
          %573 = vmatprep.mubr.f32.mxu0 0.0
          %574 = vmatmul.mubr.f32.gmra.mrb[0].mxu0 %v259
          %v575 = vpop.f32.mrb[0].mxu0
          %v576 = vadd.f32 %v361, %v575
          %v577 = vpop.f32.mrb[0].mxu0
          %578 = vdwg.mxu0
          %579 = vst [vmem:[#allocation2] sm:$0xff] %v434
          %580 = vst [vmem:[#allocation2 + $0x8] sm:$0xff] %v436
          %581 = vst [vmem:[#allocation2 + $0x10] sm:$0xff] %v505
          %582 = vst [vmem:[#allocation2 + $0x18] sm:$0xff] %v507
          %vm583 = vcmask 31744
          %584 = vst.msk [vmem:[#allocation2 + $0x20] sm:$0xff] %vm583, %v576
        $region40: #{tpu_custom_call.1} parent=35 // pred_fallthru
          _
        %v585 = vld [vmem:[%s254] sm:$0xff]
        %v586 = vld [vmem:[#allocation2 + $0x20] sm:$0xff]
        %v587 = vld [vmem:[#allocation2] sm:$0xff]
        %589 = vset.pattern.permute.xlu0 0
        %590 = vperm.xlu0 %589, %v586
        %v591 = vpop.permute.xlu0 %590
        %593 = vmatprep.subr.mxu0 0.0
        %594 = vmatpush1.xpose.msra.mxu0 %v585
        %595 = vmatprep.subr.mxu0 0.0
        %596 = vmatpush1.xpose.msra.mxu0 0.0
        %597 = vmatprep.subr.mxu0 0.0
        %598 = vmatpush1.xpose.msra.mxu0 0.0
        %599 = vmatprep.subr.mxu0 0.0
        %600 = vmatpush1.xpose.msra.mxu0 0.0
        %601 = vmatprep.subr.mxu0 0.0
        %602 = vmatpush1.xpose.msra.mxu0 0.0
        %603 = vmatprep.subr.mxu0 0.0
        %604 = vmatpush1.xpose.msra.mxu0 0.0
        %605 = vmatprep.subr.mxu0 0.0
        %606 = vmatpush1.xpose.msra.mxu0 0.0
        %607 = vmatprep.subr.mxu0 0.0
        %608 = vmatpush1.xpose.msra.mxu0 0.0
        %609 = vmatprep.subr.mxu0 0.0
        %610 = vmatpush1.xpose.msra.mxu0 0.0
        %611 = vmatprep.subr.mxu0 0.0
        %612 = vmatpush1.xpose.msra.mxu0 0.0
        %613 = vmatprep.subr.mxu0 0.0
        %614 = vmatpush1.xpose.msra.mxu0 0.0
        %615 = vmatprep.subr.mxu0 0.0
        %616 = vmatpush1.xpose.msra.mxu0 0.0
        %617 = vmatprep.subr.mxu0 0.0
        %618 = vmatpush1.xpose.msra.mxu0 0.0
        %619 = vmatprep.subr.mxu0 0.0
        %620 = vmatpush1.xpose.msra.mxu0 0.0
        %621 = vmatprep.subr.mxu0 0.0
        %622 = vmatpush1.xpose.msra.mxu0 0.0
        %623 = vmatprep.subr.mxu0 0.0
        %624 = vmatpush1.xpose.msra.mxu0 0.0
        %625 = vmatprep.subr.mxu0 0.0
        %626 = vmatpush1.xpose.msra.mxu0 0.0
        %627 = vmatprep.subr.mxu0 0.0
        %628 = vmatpush1.xpose.msra.mxu0 0.0
        %629 = vmatprep.subr.mxu0 0.0
        %630 = vmatpush1.xpose.msra.mxu0 0.0
        %631 = vmatprep.subr.mxu0 0.0
        %632 = vmatpush1.xpose.msra.mxu0 0.0
        %633 = vmatprep.subr.mxu0 0.0
        %634 = vmatpush1.xpose.msra.mxu0 0.0
        %635 = vmatprep.subr.mxu0 0.0
        %636 = vmatpush1.xpose.msra.mxu0 0.0
        %637 = vmatprep.subr.mxu0 0.0
        %638 = vmatpush1.xpose.msra.mxu0 0.0
        %639 = vmatprep.subr.mxu0 0.0
        %640 = vmatpush1.xpose.msra.mxu0 0.0
        %641 = vmatprep.subr.mxu0 0.0
        %642 = vmatpush1.xpose.msra.mxu0 0.0
        %643 = vmatprep.subr.mxu0 0.0
        %644 = vmatpush1.xpose.msra.mxu0 0.0
        %645 = vmatprep.subr.mxu0 0.0
        %646 = vmatpush1.xpose.msra.mxu0 0.0
        %647 = vmatprep.subr.mxu0 0.0
        %648 = vmatpush1.xpose.msra.mxu0 0.0
        %649 = vmatprep.subr.mxu0 0.0
        %650 = vmatpush1.xpose.msra.mxu0 0.0
        %651 = vmatprep.subr.mxu0 0.0
        %652 = vmatpush1.xpose.msra.mxu0 0.0
        %653 = vmatprep.subr.mxu0 0.0
        %654 = vmatpush1.xpose.msra.mxu0 0.0
        %655 = vmatprep.subr.mxu0 0.0
        %656 = vmatpush1.xpose.msra.mxu0 0.0
        %657 = vmatprep.mubr.f32.mxu0 0.0
        %658 = vmatmul.mubr.f32.gmra.mrb[0].mxu0 %v587
        %v659 = vpop.f32.mrb[0].mxu0
        %v660 = vadd.f32 %v591, %v659
        %v661 = vpop.f32.mrb[0].mxu0
        %662 = vdwg.mxu0
        %vm663 = vcmask 64512
        %664 = vst.msk [vmem:[%s240] sm:$0xff] %vm663, %v660
        %v665 = vld [vmem:[#allocation2 + $0x8] sm:$0xff]
        %666 = vset.pattern.permute.xlu0 1
        %667 = vperm.xlu0 %666, %v586
        %v668 = vpop.permute.xlu0 %667
        %670 = vmatprep.subr.mxu0 0.0
        %671 = vmatpush1.xpose.msra.mxu0 %v585
        %672 = vmatprep.subr.mxu0 0.0
        %673 = vmatpush1.xpose.msra.mxu0 0.0
        %674 = vmatprep.subr.mxu0 0.0
        %675 = vmatpush1.xpose.msra.mxu0 0.0
        %676 = vmatprep.subr.mxu0 0.0
        %677 = vmatpush1.xpose.msra.mxu0 0.0
        %678 = vmatprep.subr.mxu0 0.0
        %679 = vmatpush1.xpose.msra.mxu0 0.0
        %680 = vmatprep.subr.mxu0 0.0
        %681 = vmatpush1.xpose.msra.mxu0 0.0
        %682 = vmatprep.subr.mxu0 0.0
        %683 = vmatpush1.xpose.msra.mxu0 0.0
        %684 = vmatprep.subr.mxu0 0.0
        %685 = vmatpush1.xpose.msra.mxu0 0.0
        %686 = vmatprep.subr.mxu0 0.0
        %687 = vmatpush1.xpose.msra.mxu0 0.0
        %688 = vmatprep.subr.mxu0 0.0
        %689 = vmatpush1.xpose.msra.mxu0 0.0
        %690 = vmatprep.subr.mxu0 0.0
        %691 = vmatpush1.xpose.msra.mxu0 0.0
        %692 = vmatprep.subr.mxu0 0.0
        %693 = vmatpush1.xpose.msra.mxu0 0.0
        %694 = vmatprep.subr.mxu0 0.0
        %695 = vmatpush1.xpose.msra.mxu0 0.0
        %696 = vmatprep.subr.mxu0 0.0
        %697 = vmatpush1.xpose.msra.mxu0 0.0
        %698 = vmatprep.subr.mxu0 0.0
        %699 = vmatpush1.xpose.msra.mxu0 0.0
        %700 = vmatprep.subr.mxu0 0.0
        %701 = vmatpush1.xpose.msra.mxu0 0.0
        %702 = vmatprep.subr.mxu0 0.0
        %703 = vmatpush1.xpose.msra.mxu0 0.0
        %704 = vmatprep.subr.mxu0 0.0
        %705 = vmatpush1.xpose.msra.mxu0 0.0
        %706 = vmatprep.subr.mxu0 0.0
        %707 = vmatpush1.xpose.msra.mxu0 0.0
        %708 = vmatprep.subr.mxu0 0.0
        %709 = vmatpush1.xpose.msra.mxu0 0.0
        %710 = vmatprep.subr.mxu0 0.0
        %711 = vmatpush1.xpose.msra.mxu0 0.0
        %712 = vmatprep.subr.mxu0 0.0
        %713 = vmatpush1.xpose.msra.mxu0 0.0
        %714 = vmatprep.subr.mxu0 0.0
        %715 = vmatpush1.xpose.msra.mxu0 0.0
        %716 = vmatprep.subr.mxu0 0.0
        %717 = vmatpush1.xpose.msra.mxu0 0.0
        %718 = vmatprep.subr.mxu0 0.0
        %719 = vmatpush1.xpose.msra.mxu0 0.0
        %720 = vmatprep.subr.mxu0 0.0
        %721 = vmatpush1.xpose.msra.mxu0 0.0
        %722 = vmatprep.subr.mxu0 0.0
        %723 = vmatpush1.xpose.msra.mxu0 0.0
        %724 = vmatprep.subr.mxu0 0.0
        %725 = vmatpush1.xpose.msra.mxu0 0.0
        %726 = vmatprep.subr.mxu0 0.0
        %727 = vmatpush1.xpose.msra.mxu0 0.0
        %728 = vmatprep.subr.mxu0 0.0
        %729 = vmatpush1.xpose.msra.mxu0 0.0
        %730 = vmatprep.subr.mxu0 0.0
        %731 = vmatpush1.xpose.msra.mxu0 0.0
        %732 = vmatprep.subr.mxu0 0.0
        %733 = vmatpush1.xpose.msra.mxu0 0.0
        %734 = vmatprep.mubr.f32.mxu0 0.0
        %735 = vmatmul.mubr.f32.gmra.mrb[0].mxu0 %v665
        %v736 = vpop.f32.mrb[0].mxu0
        %v737 = vadd.f32 %v668, %v736
        %v738 = vpop.f32.mrb[0].mxu0
        %739 = vdwg.mxu0
        %s740 = scalar_lea.vmem %s240, 8 [#allocation3]
        %741 = vst.msk [vmem:[%s740] sm:$0xff] %vm663, %v737
        %v742 = vld [vmem:[#allocation2 + $0x10] sm:$0xff]
        %743 = vset.pattern.permute.xlu0 2
        %744 = vperm.xlu0 %743, %v586
        %v745 = vpop.permute.xlu0 %744
        %747 = vmatprep.subr.mxu0 0.0
        %748 = vmatpush1.xpose.msra.mxu0 %v585
        %749 = vmatprep.subr.mxu0 0.0
        %750 = vmatpush1.xpose.msra.mxu0 0.0
        %751 = vmatprep.subr.mxu0 0.0
        %752 = vmatpush1.xpose.msra.mxu0 0.0
        %753 = vmatprep.subr.mxu0 0.0
        %754 = vmatpush1.xpose.msra.mxu0 0.0
        %755 = vmatprep.subr.mxu0 0.0
        %756 = vmatpush1.xpose.msra.mxu0 0.0
        %757 = vmatprep.subr.mxu0 0.0
        %758 = vmatpush1.xpose.msra.mxu0 0.0
        %759 = vmatprep.subr.mxu0 0.0
        %760 = vmatpush1.xpose.msra.mxu0 0.0
        %761 = vmatprep.subr.mxu0 0.0
        %762 = vmatpush1.xpose.msra.mxu0 0.0
        %763 = vmatprep.subr.mxu0 0.0
        %764 = vmatpush1.xpose.msra.mxu0 0.0
        %765 = vmatprep.subr.mxu0 0.0
        %766 = vmatpush1.xpose.msra.mxu0 0.0
        %767 = vmatprep.subr.mxu0 0.0
        %768 = vmatpush1.xpose.msra.mxu0 0.0
        %769 = vmatprep.subr.mxu0 0.0
        %770 = vmatpush1.xpose.msra.mxu0 0.0
        %771 = vmatprep.subr.mxu0 0.0
        %772 = vmatpush1.xpose.msra.mxu0 0.0
        %773 = vmatprep.subr.mxu0 0.0
        %774 = vmatpush1.xpose.msra.mxu0 0.0
        %775 = vmatprep.subr.mxu0 0.0
        %776 = vmatpush1.xpose.msra.mxu0 0.0
        %777 = vmatprep.subr.mxu0 0.0
        %778 = vmatpush1.xpose.msra.mxu0 0.0
        %779 = vmatprep.subr.mxu0 0.0
        %780 = vmatpush1.xpose.msra.mxu0 0.0
        %781 = vmatprep.subr.mxu0 0.0
        %782 = vmatpush1.xpose.msra.mxu0 0.0
        %783 = vmatprep.subr.mxu0 0.0
        %784 = vmatpush1.xpose.msra.mxu0 0.0
        %785 = vmatprep.subr.mxu0 0.0
        %786 = vmatpush1.xpose.msra.mxu0 0.0
        %787 = vmatprep.subr.mxu0 0.0
        %788 = vmatpush1.xpose.msra.mxu0 0.0
        %789 = vmatprep.subr.mxu0 0.0
        %790 = vmatpush1.xpose.msra.mxu0 0.0
        %791 = vmatprep.subr.mxu0 0.0
        %792 = vmatpush1.xpose.msra.mxu0 0.0
        %793 = vmatprep.subr.mxu0 0.0
        %794 = vmatpush1.xpose.msra.mxu0 0.0
        %795 = vmatprep.subr.mxu0 0.0
        %796 = vmatpush1.xpose.msra.mxu0 0.0
        %797 = vmatprep.subr.mxu0 0.0
        %798 = vmatpush1.xpose.msra.mxu0 0.0
        %799 = vmatprep.subr.mxu0 0.0
        %800 = vmatpush1.xpose.msra.mxu0 0.0
        %801 = vmatprep.subr.mxu0 0.0
        %802 = vmatpush1.xpose.msra.mxu0 0.0
        %803 = vmatprep.subr.mxu0 0.0
        %804 = vmatpush1.xpose.msra.mxu0 0.0
        %805 = vmatprep.subr.mxu0 0.0
        %806 = vmatpush1.xpose.msra.mxu0 0.0
        %807 = vmatprep.subr.mxu0 0.0
        %808 = vmatpush1.xpose.msra.mxu0 0.0
        %809 = vmatprep.subr.mxu0 0.0
        %810 = vmatpush1.xpose.msra.mxu0 0.0
        %811 = vmatprep.mubr.f32.mxu0 0.0
        %812 = vmatmul.mubr.f32.gmra.mrb[0].mxu0 %v742
        %v813 = vpop.f32.mrb[0].mxu0
        %v814 = vadd.f32 %v745, %v813
        %v815 = vpop.f32.mrb[0].mxu0
        %816 = vdwg.mxu0
        %s817 = scalar_lea.vmem %s240, 16 [#allocation3]
        %818 = vst.msk [vmem:[%s817] sm:$0xff] %vm663, %v814
        %v819 = vld [vmem:[#allocation2 + $0x18] sm:$0xff]
        %820 = vset.pattern.permute.xlu0 3
        %821 = vperm.xlu0 %820, %v586
        %v822 = vpop.permute.xlu0 %821
        %824 = vmatprep.subr.mxu0 0.0
        %825 = vmatpush1.xpose.msra.mxu0 %v585
        %826 = vmatprep.subr.mxu0 0.0
        %827 = vmatpush1.xpose.msra.mxu0 0.0
        %828 = vmatprep.subr.mxu0 0.0
        %829 = vmatpush1.xpose.msra.mxu0 0.0
        %830 = vmatprep.subr.mxu0 0.0
        %831 = vmatpush1.xpose.msra.mxu0 0.0
        %832 = vmatprep.subr.mxu0 0.0
        %833 = vmatpush1.xpose.msra.mxu0 0.0
        %834 = vmatprep.subr.mxu0 0.0
        %835 = vmatpush1.xpose.msra.mxu0 0.0
        %836 = vmatprep.subr.mxu0 0.0
        %837 = vmatpush1.xpose.msra.mxu0 0.0
        %838 = vmatprep.subr.mxu0 0.0
        %839 = vmatpush1.xpose.msra.mxu0 0.0
        %840 = vmatprep.subr.mxu0 0.0
        %841 = vmatpush1.xpose.msra.mxu0 0.0
        %842 = vmatprep.subr.mxu0 0.0
        %843 = vmatpush1.xpose.msra.mxu0 0.0
        %844 = vmatprep.subr.mxu0 0.0
        %845 = vmatpush1.xpose.msra.mxu0 0.0
        %846 = vmatprep.subr.mxu0 0.0
        %847 = vmatpush1.xpose.msra.mxu0 0.0
        %848 = vmatprep.subr.mxu0 0.0
        %849 = vmatpush1.xpose.msra.mxu0 0.0
        %850 = vmatprep.subr.mxu0 0.0
        %851 = vmatpush1.xpose.msra.mxu0 0.0
        %852 = vmatprep.subr.mxu0 0.0
        %853 = vmatpush1.xpose.msra.mxu0 0.0
        %854 = vmatprep.subr.mxu0 0.0
        %855 = vmatpush1.xpose.msra.mxu0 0.0
        %856 = vmatprep.subr.mxu0 0.0
        %857 = vmatpush1.xpose.msra.mxu0 0.0
        %858 = vmatprep.subr.mxu0 0.0
        %859 = vmatpush1.xpose.msra.mxu0 0.0
        %860 = vmatprep.subr.mxu0 0.0
        %861 = vmatpush1.xpose.msra.mxu0 0.0
        %862 = vmatprep.subr.mxu0 0.0
        %863 = vmatpush1.xpose.msra.mxu0 0.0
        %864 = vmatprep.subr.mxu0 0.0
        %865 = vmatpush1.xpose.msra.mxu0 0.0
        %866 = vmatprep.subr.mxu0 0.0
        %867 = vmatpush1.xpose.msra.mxu0 0.0
        %868 = vmatprep.subr.mxu0 0.0
        %869 = vmatpush1.xpose.msra.mxu0 0.0
        %870 = vmatprep.subr.mxu0 0.0
        %871 = vmatpush1.xpose.msra.mxu0 0.0
        %872 = vmatprep.subr.mxu0 0.0
        %873 = vmatpush1.xpose.msra.mxu0 0.0
        %874 = vmatprep.subr.mxu0 0.0
        %875 = vmatpush1.xpose.msra.mxu0 0.0
        %876 = vmatprep.subr.mxu0 0.0
        %877 = vmatpush1.xpose.msra.mxu0 0.0
        %878 = vmatprep.subr.mxu0 0.0
        %879 = vmatpush1.xpose.msra.mxu0 0.0
        %880 = vmatprep.subr.mxu0 0.0
        %881 = vmatpush1.xpose.msra.mxu0 0.0
        %882 = vmatprep.subr.mxu0 0.0
        %883 = vmatpush1.xpose.msra.mxu0 0.0
        %884 = vmatprep.subr.mxu0 0.0
        %885 = vmatpush1.xpose.msra.mxu0 0.0
        %886 = vmatprep.subr.mxu0 0.0
        %887 = vmatpush1.xpose.msra.mxu0 0.0
        %888 = vmatprep.mubr.f32.mxu0 0.0
        %889 = vmatmul.mubr.f32.gmra.mrb[0].mxu0 %v819
        %v890 = vpop.f32.mrb[0].mxu0
        %v891 = vadd.f32 %v822, %v890
        %v892 = vpop.f32.mrb[0].mxu0
        %893 = vdwg.mxu0
        %s894 = scalar_lea.vmem %s240, 24 [#allocation3]
        %895 = vst.msk [vmem:[%s894] sm:$0xff] %vm663, %v891
        %s896 = sand.u32 %s147, 1
        %s897 = scalar_lea.sflag [#allocation4], %s896
        %s898 = sand.u32 %s147, 1
        %s899 = smul.addr %s898, 32
        %s900 = scalar_lea.vmem [#allocation3], %s899
        // Predicated region
        $region41: #{tpu_custom_call.1} parent=35 // pred_check
          %p901 = pneg %p157
        $region42: #{tpu_custom_call.1} parent=35 // pred_check_branch
          %903 = sbr.rel (%p901) target = $region44
        $region43: #{tpu_custom_call.1} parent=35 // pred_region
          %s905 = ssub.s32 512, 512
          %906 = vsyncadd %s897, %s905
          %s907 = sadd.s32 %s25, %s24
          %s908 = smul.addr %s23, 4
          %s909 = sadd.s32 %s907, %s908
          %s910 = smul.addr %s909, 128
          %s911 = scalar_lea.hbm %s4, %s910
          %s912 = sshll.u32 %s900, 4
          %s913 = int_to_ptr.vmem [resolvable:$true] %s912
          %918 = dma.vmem_to_hbm [thread:$0]  %s913, 512, %s911, %s897, 128, 128, 8
        $region44: #{tpu_custom_call.1} parent=35 // pred_fallthru
          _
      $region36: #{tpu_custom_call.1} parent=5 // pred_fallthru
        _
      %p919 = scmp.le.s32.totalorder 2, %s13
      // Predicated region
      $region45: #{tpu_custom_call.1} parent=5 // pred_check
        %p920 = pneg %p919
      $region46: #{tpu_custom_call.1} parent=5 // pred_check_branch
        %922 = sbr.rel (%p920) target = $region48
      $region47: #{tpu_custom_call.1} parent=5 // pred_region
        %s923 = ssub.s32 %s13, 2
        // Predicated region
        $region49: #{tpu_custom_call.1} parent=47 // pred_check
          %p924 = pneg %p163
        $region50: #{tpu_custom_call.1} parent=47 // pred_check_branch
          %926 = sbr.rel (%p924) target = $region52
        $region51: #{tpu_custom_call.1} parent=47 // pred_region
          %s927 = sand.u32 %s148, 1
          %s928 = scalar_lea.sflag [#allocation4], %s927
          %s929 = sand.u32 %s148, 1
          %s930 = smul.addr %s929, 32
          %s931 = scalar_lea.vmem [#allocation3], %s930
          %932 = dma.done %s928, 512
        $region52: #{tpu_custom_call.1} parent=47 // pred_fallthru
          _
      $region48: #{tpu_custom_call.1} parent=5 // pred_fallthru
        _
    $region6: #{tpu_custom_call.1} parent=1 // loop_footer
      %s17 = sadd.s32 1, %s13
    $region7: #{tpu_custom_call.1} parent=1 // loop_footer_branch
      %12 = sbr.rel target = $region3
    $region8: #{tpu_custom_call.1} parent=1 // loop_exit
      _
    %933 = vsyncpa [#allocation4], 1
    %s934 = scalar_lea.sflag [#allocation4], 1
    %935 = vsyncpa %s934, 1

</llo_original>
